<compile_context>
chip_gen: v6e
topology: v6e:2x2x1
jax: 0.10.0
libtpu: 0.0.40
codegen_flags: <defaults>
</compile_context>

<pallas_src>
import functools
import math

import jax
import jax.numpy as jnp
from jax.experimental import pallas as pl
from jax.experimental.pallas import tpu as pltpu


def _attention_block_kernel(x_ref, kv_ref, wq_ref, wkv_ref, o_ref, *, dim_attn, use_bf16):
    bb, L, D = x_ref.shape
    _, Lk, _ = kv_ref.shape
    A = dim_attn
    Dv = o_ref.shape[-1]

    # Cast only the matmul operands when in fast mode; accumulation stays f32 and all
    # softmax / elementwise math stays f32 (v5e VPU/EUP have no bf16 path).
    mm = (lambda t: t.astype(jnp.bfloat16)) if use_bf16 else (lambda t: t)

    # Fused projections: one (bb*L, D) @ (D, A) matmul for Q (scale pre-folded into Wq)
    # and one (bb*Lk, D) @ (D, A+Dv) matmul for K|V. Leading-dim reshapes are
    # layout-preserving (L, Lk multiples of 8 here).
    x2 = x_ref[...].reshape(bb * L, D)
    kv2 = kv_ref[...].reshape(bb * Lk, D)
    q = jnp.dot(mm(x2), mm(wq_ref[...]),
                preferred_element_type=jnp.float32).reshape(bb, L, A)
    kvp = jnp.dot(mm(kv2), mm(wkv_ref[...]),
                  preferred_element_type=jnp.float32).reshape(bb, Lk, A + Dv)
    k = kvp[..., :A]          # (bb, Lk, A)
    v = kvp[..., A:]          # (bb, Lk, Dv)

    # Scores: contract the attention dim of Q and K directly (no explicit K transpose).
    s = jax.lax.dot_general(
        mm(q), mm(k),
        dimension_numbers=(((2,), (2,)), ((0,), (0,))),
        preferred_element_type=jnp.float32)                     # (bb, L, Lk)

    # Numerically-stable softmax in f32; reciprocal-multiply for the denominator.
    m = jnp.max(s, axis=-1, keepdims=True)
    e = jnp.exp(s - m)
    denom = jnp.sum(e, axis=-1, keepdims=True)
    p = e * pl.reciprocal(denom, approx=use_bf16)               # exact in default mode

    o = jax.lax.dot_general(
        mm(p), mm(v),
        dimension_numbers=(((2,), (1,)), ((0,), (0,))),
        preferred_element_type=jnp.float32)                     # (bb, L, Dv)
    o_ref[...] = o.astype(o_ref.dtype)


def attention_block(x, kv, params, *, dim_attn, block_b=None, use_bf16=False):
    """Pallas AttentionBlock forward (attn_type='full'). kv=None -> self-attention."""
    kv_in = x if kv is None else kv
    B, L, D = x.shape
    _, Lk, _ = kv_in.shape
    A = dim_attn

    wq = params["wq_t_scaled"]      # (D, A), scale folded in at init
    wkv = params["wkv_t"]           # (D, A + D), fused K|V projection

    if block_b is None:
        # <=2 grid steps: one per v7x TensorCore; batches folded per step so single-TC
        # v5e/v6e still get big blocks. Pass block_b=B to fully collapse the grid.
        block_b = B // 2 if (B > 1 and B % 2 == 0) else 1
    assert B % block_b == 0, "block_b must divide batch"
    grid = (B // block_b,)

    kernel = functools.partial(_attention_block_kernel, dim_attn=A, use_bf16=use_bf16)
    return pl.pallas_call(
        kernel,
        out_shape=jax.ShapeDtypeStruct((B, L, D), x.dtype),
        grid=grid,
        in_specs=[
            pl.BlockSpec((block_b, L, D), lambda i: (i, 0, 0)),
            pl.BlockSpec((block_b, Lk, D), lambda i: (i, 0, 0)),
            pl.BlockSpec((D, A), lambda i: (0, 0)),          # replicated weights
            pl.BlockSpec((D, A + D), lambda i: (0, 0)),
        ],
        out_specs=pl.BlockSpec((block_b, L, D), lambda i: (i, 0, 0)),
        compiler_params=pltpu.CompilerParams(
            dimension_semantics=("parallel",),
            vmem_limit_bytes=32 * 1024 * 1024,
        ),
    )(x, kv_in, wq, wkv)


def init_params(key, dim_val, dim_attn):
    """Torch-equivalent init plus one-time kernel-layout prep (not per-call work)."""
    D, A = dim_val, dim_attn
    k1, k2, k3 = jax.random.split(key, 3)

    def u(k, shape, fan_in):
        bound = 1.0 / math.sqrt(fan_in)
        return jax.random.uniform(k, shape, jnp.float32, -bound, bound)

    # torch Linear weights are (out_features, in_features), bias=False
    wq = u(k1, (A, D), D)     # Query: Linear(dim_val, dim_attn)
    wk = u(k2, (A, D), D)     # Key:   Linear(dim_val, dim_attn)
    wv = u(k3, (D, D), D)     # Value: Linear(dim_val, dim_val)

    params = {"wq_raw": wq, "wk_raw": wk, "wv_raw": wv}
    # Pre-transpose to (in, out), fold 1/sqrt(dim_attn) into Wq, fuse K|V into one operand.
    params["wq_t_scaled"] = wq.T * (1.0 / math.sqrt(A))            # (D, A)
    params["wkv_t"] = jnp.concatenate([wk.T, wv.T], axis=1)        # (D, A + D)
    return params


def reference_attention_block(x, kv, params, *, dim_attn):
    """Pure-JAX transcription of the PyTorch forward (eval mode) for verification."""
    kv_in = x if kv is None else kv
    q = x @ params["wq_raw"].T
    k = kv_in @ params["wk_raw"].T
    v = kv_in @ params["wv_raw"].T
    s = jnp.matmul(q, jnp.swapaxes(k, -1, -2)) / math.sqrt(q.shape[-1])
    p = jax.nn.softmax(s, axis=-1)
    return jnp.matmul(p, v)


if __name__ == "__main__":
    B, L, Lk = 2, 8, 16
    dim_val, dim_attn = 32, 32   # attn_type='full'
    # TODO(synk): attn_type='prob' (ProbAttention) and 'query_selector' paths use
    # data-dependent top-k gather/scatter and are not implemented in the kernel.

    key = jax.random.PRNGKey(0)
    kx, kkv, kp = jax.random.split(key, 3)
    x = jax.random.normal(kx, (B, L, dim_val), jnp.float32)
    kv = jax.random.normal(kkv, (B, Lk, dim_val), jnp.float32)
    params = init_params(kp, dim_val, dim_attn)

    # Self-attention path (kv=None) -- the AttentionBlock default.
    out_self = attention_block(x, None, params, dim_attn=dim_attn)
    out_self = jax.block_until_ready(out_self)
    ref_self = reference_attention_block(x, None, params, dim_attn=dim_attn)
    assert out_self.shape == (B, L, dim_val)
    err_s = float(jnp.max(jnp.abs(out_self - ref_self)))
    assert jnp.allclose(out_self, ref_self, rtol=1e-4, atol=1e-4), f"self max abs err = {err_s}"

    # Cross-attention path (kv provided).
    out_x = attention_block(x, kv, params, dim_attn=dim_attn)
    out_x = jax.block_until_ready(out_x)
    ref_x = reference_attention_block(x, kv, params, dim_attn=dim_attn)
    err_x = float(jnp.max(jnp.abs(out_x - ref_x)))
    assert jnp.allclose(out_x, ref_x, rtol=1e-4, atol=1e-4), f"cross max abs err = {err_x}"

    print("KERNEL_OK")
</pallas_src>

<mosaic_0001>
module attributes {stable_mosaic.version = 11 : i64} {
  func.func @_attention_block_kernel(%arg0: i32, %arg1: memref<1x8x32xf32, #tpu.memory_space<vmem>>, %arg2: memref<1x8x32xf32, #tpu.memory_space<vmem>>, %arg3: memref<32x32xf32, #tpu.memory_space<vmem>>, %arg4: memref<32x64xf32, #tpu.memory_space<vmem>>, %arg5: memref<1x8x32xf32, #tpu.memory_space<vmem>>) attributes {dimension_semantics = [#tpu.dimension_semantics<parallel>], iteration_bounds = array<i64: 2>, scalar_prefetch = 0 : i64, scratch_operands = 0 : i64, tpu.core_type = #tpu.core_type<tc>, window_params = [{transform_indices = @transform_0, window_bounds = array<i64: 1, 8, 32>}, {transform_indices = @transform_1, window_bounds = array<i64: 1, 8, 32>}, {pipeline_mode = #tpu.pipeline_mode<synchronous>, transform_indices = @transform_2, window_bounds = array<i64: 32, 32>}, {pipeline_mode = #tpu.pipeline_mode<synchronous>, transform_indices = @transform_3, window_bounds = array<i64: 32, 64>}, {transform_indices = @transform_4, window_bounds = array<i64: 1, 8, 32>}]} {
    %c0 = arith.constant 0 : index
    %c0_0 = arith.constant 0 : index
    %c0_1 = arith.constant 0 : index
    %0 = vector.load %arg1[%c0, %c0_0, %c0_1] : memref<1x8x32xf32, #tpu.memory_space<vmem>>, vector<1x8x32xf32>
    %1 = vector.shape_cast %0 : vector<1x8x32xf32> to vector<8x32xf32>
    %c0_2 = arith.constant 0 : index
    %c0_3 = arith.constant 0 : index
    %c0_4 = arith.constant 0 : index
    %2 = vector.load %arg2[%c0_2, %c0_3, %c0_4] : memref<1x8x32xf32, #tpu.memory_space<vmem>>, vector<1x8x32xf32>
    %3 = vector.shape_cast %2 : vector<1x8x32xf32> to vector<8x32xf32>
    %c0_5 = arith.constant 0 : index
    %c0_6 = arith.constant 0 : index
    %4 = vector.load %arg3[%c0_5, %c0_6] : memref<32x32xf32, #tpu.memory_space<vmem>>, vector<32x32xf32>
    %cst = arith.constant dense<0.000000e+00> : vector<8x32xf32>
    %5 = tpu.matmul %1, %4, %cst {dimension_numbers = #tpu.dot_dimension_numbers<[1], [0], [0], [1], [0, 0, 1, 1], [], []>} : vector<8x32xf32>, vector<32x32xf32>, vector<8x32xf32> -> vector<8x32xf32>
    %6 = vector.shape_cast %5 : vector<8x32xf32> to vector<1x8x32xf32>
    %c0_7 = arith.constant 0 : index
    %c0_8 = arith.constant 0 : index
    %7 = vector.load %arg4[%c0_7, %c0_8] : memref<32x64xf32, #tpu.memory_space<vmem>>, vector<32x64xf32>
    %cst_9 = arith.constant dense<0.000000e+00> : vector<8x64xf32>
    %8 = tpu.matmul %3, %7, %cst_9 {dimension_numbers = #tpu.dot_dimension_numbers<[1], [0], [0], [1], [0, 0, 1, 1], [], []>} : vector<8x32xf32>, vector<32x64xf32>, vector<8x64xf32> -> vector<8x64xf32>
    %9 = vector.shape_cast %8 : vector<8x64xf32> to vector<1x8x64xf32>
    %10 = vector.extract_strided_slice %9 {offsets = [0, 0, 0], sizes = [1, 8, 32], strides = [1, 1, 1]} : vector<1x8x64xf32> to vector<1x8x32xf32>
    %11 = vector.extract_strided_slice %9 {offsets = [0, 0, 32], sizes = [1, 8, 32], strides = [1, 1, 1]} : vector<1x8x64xf32> to vector<1x8x32xf32>
    %cst_10 = arith.constant dense<0.000000e+00> : vector<1x8x8xf32>
    %12 = tpu.matmul %6, %10, %cst_10 {dimension_numbers = #tpu.dot_dimension_numbers<[2], [2], [1], [1], [0, 0, 0, 1, 1, 1], [0], [0]>} : vector<1x8x32xf32>, vector<1x8x32xf32>, vector<1x8x8xf32> -> vector<1x8x8xf32>
    %cst_11 = arith.constant dense<0xFF800000> : vector<1x8xf32>
    %13 = vector.multi_reduction <maximumf>, %12, %cst_11 [2] : vector<1x8x8xf32> to vector<1x8xf32>
    %14 = vector.shape_cast %13 : vector<1x8xf32> to vector<1x8x1xf32>
    %15 = vector.broadcast %14 : vector<1x8x1xf32> to vector<1x8x8xf32>
    %16 = arith.subf %12, %15 : vector<1x8x8xf32>
    %17 = math.exp %16 : vector<1x8x8xf32>
    %cst_12 = arith.constant dense<0.000000e+00> : vector<1x8xf32>
    %18 = vector.multi_reduction <add>, %17, %cst_12 [2] : vector<1x8x8xf32> to vector<1x8xf32>
    %19 = vector.shape_cast %18 : vector<1x8xf32> to vector<1x8x1xf32>
    %20 = tpu.reciprocal %19 : vector<1x8x1xf32> -> vector<1x8x1xf32>
    %21 = vector.broadcast %20 : vector<1x8x1xf32> to vector<1x8x8xf32>
    %22 = arith.mulf %17, %21 : vector<1x8x8xf32>
    %cst_13 = arith.constant dense<0.000000e+00> : vector<1x8x32xf32>
    %23 = tpu.matmul %22, %11, %cst_13 {dimension_numbers = #tpu.dot_dimension_numbers<[2], [1], [1], [2], [0, 0, 0, 1, 1, 2], [0], [0]>} : vector<1x8x8xf32>, vector<1x8x32xf32>, vector<1x8x32xf32> -> vector<1x8x32xf32>
    %c0_14 = arith.constant 0 : index
    %c0_15 = arith.constant 0 : index
    %c0_16 = arith.constant 0 : index
    %24 = vector.load %arg5[%c0_14, %c0_15, %c0_16] : memref<1x8x32xf32, #tpu.memory_space<vmem>>, vector<1x8x32xf32>
    tpu.vector_store %arg5[%c0_14, %c0_15, %c0_16], %23 {strides = array<i32>} : memref<1x8x32xf32, #tpu.memory_space<vmem>>, vector<1x8x32xf32>,
    return
  }
  func.func @transform_0(%arg0: i32) -> (i32, i32, i32) {
    %c0_i32 = arith.constant 0 : i32
    %c0_i32_0 = arith.constant 0 : i32
    %c0_i32_1 = arith.constant 0 : i32
    return %arg0, %c0_i32, %c0_i32_0 : i32, i32, i32
  }
  func.func @transform_1(%arg0: i32) -> (i32, i32, i32) {
    %c0_i32 = arith.constant 0 : i32
    %c0_i32_0 = arith.constant 0 : i32
    %c0_i32_1 = arith.constant 0 : i32
    return %arg0, %c0_i32, %c0_i32_0 : i32, i32, i32
  }
  func.func @transform_2(%arg0: i32) -> (i32, i32) {
    %c0_i32 = arith.constant 0 : i32
    %c0_i32_0 = arith.constant 0 : i32
    %c0_i32_1 = arith.constant 0 : i32
    return %c0_i32, %c0_i32_0 : i32, i32
  }
  func.func @transform_3(%arg0: i32) -> (i32, i32) {
    %c0_i32 = arith.constant 0 : i32
    %c0_i32_0 = arith.constant 0 : i32
    %c0_i32_1 = arith.constant 0 : i32
    return %c0_i32, %c0_i32_0 : i32, i32
  }
  func.func @transform_4(%arg0: i32) -> (i32, i32, i32) {
    %c0_i32 = arith.constant 0 : i32
    %c0_i32_0 = arith.constant 0 : i32
    %c0_i32_1 = arith.constant 0 : i32
    return %arg0, %c0_i32, %c0_i32_0 : i32, i32, i32
  }
}

</mosaic_0001>

<llo_original>
// kernel: tpu_custom_call.1
$region0: #{tpu_custom_call.1}
  #allocation0 [shape = 'u32[]', space=smem, size = 0x4, offset = 0x4, fixed_abs, tag = 'smem constant byte address 0x4 - core index']
  #allocation1 [shape = 'u32[144,128]{1,0:T(1,128)}', space=vmem, size = 0x12000, scoped, tag = 'internal scratch']
  %s0 = inlined_call_operand.hbm [shape: f32[2,8,32], index: 0, kind: input, shape index: {}]
  %s1 = inlined_call_operand.hbm [shape: f32[2,8,32], index: 1, kind: input, shape index: {}]
  %s2 = inlined_call_operand.hbm [shape: f32[32,32], index: 2, kind: input, shape index: {}]
  %s3 = inlined_call_operand.hbm [shape: f32[32,64], index: 3, kind: input, shape index: {}]
  %s4 = inlined_call_operand.hbm [shape: f32[2,8,32], index: 4, kind: output, shape index: {}]
  %s5 = sld [smem:[#allocation0]]
  $region65: #{tpu_custom_call.1} parent=0
    _
  %s7 = ssub.s32 1, %s5
  %s8 = scalar_select 0, %s7, %s5
  $region1: #{tpu_custom_call.1} parent=0
    #allocation2 [shape = 'u8[8192]{0}', space=vmem, size = 0x2000, scoped, tag = 'input window, operand 0']
    #allocation3 [shape = 's32[2]{0}', space=sflag, size = 0x8, scoped, tag = 'scoped memory for tpu_custom_call.1']
    #allocation4 [shape = 's32[2]{0}', space=sflag, size = 0x8, scoped, tag = 'scoped memory for tpu_custom_call.1']
    #allocation5 [shape = 'u8[8192]{0}', space=vmem, size = 0x2000, scoped, tag = 'input window, operand 1']
    #allocation6 [shape = 's32[2]{0}', space=sflag, size = 0x8, scoped, tag = 'scoped memory for tpu_custom_call.1']
    #allocation7 [shape = 'u8[16384]{0}', space=vmem, size = 0x4000, scoped, tag = 'input window, operand 2, single buffered']
    #allocation8 [shape = 'u8[16384]{0}', space=vmem, size = 0x4000, scoped, tag = 'input window, operand 3, single buffered']
    #allocation9 [shape = 's32[1]{0}', space=sflag, size = 0x4, scoped, tag = 'scoped memory for tpu_custom_call.1']
    #allocation10 [shape = 'u8[8192]{0}', space=vmem, size = 0x2000, scoped, tag = 'output window, operand 0']
    %9 = vsyncpa [#allocation3], 0
    %s10 = scalar_lea.sflag [#allocation3], 1
    %11 = vsyncpa %s10, 0
    %12 = vsyncpa [#allocation6], 0
    %s13 = scalar_lea.sflag [#allocation6], 1
    %14 = vsyncpa %s13, 0
    %15 = vsyncpa [#allocation9], 0
    %16 = vsyncpa [#allocation4], 0
    %s17 = scalar_lea.sflag [#allocation4], 1
    %18 = vsyncpa %s17, 0
    loop: start=0, step=1, limit=4
    $region2: #{tpu_custom_call.1} parent=1 // loop_pre_header
      _
    $region3: #{tpu_custom_call.1} parent=1 // loop_header
      %s20 = sphi 0, %s24
      %p21 = scmp.ge.s32.totalorder %s20, 4
      %s30 = sphi 0, %s32
      %s33 = sphi 0, %s30
      %s34 = sphi 0, %s33
      %s50 = sphi 0, %s34
      %s56 = sphi 0, %s58
      %s59 = sphi 0, %s56
      %s60 = sphi 0, %s59
      %s76 = sphi 0, %s60
      %s80 = sphi 0, %s80
      %s82 = sphi 0, %s80
      %s83 = sphi 0, %s82
      %s97 = sphi 0, %s83
      %s101 = sphi 0, %s101
      %s103 = sphi 0, %s101
      %s104 = sphi 0, %s103
      %s118 = sphi 0, %s104
      %s124 = sphi 0, %s126
      %s127 = sphi 0, %s124
      %s128 = sphi 0, %s127
      %s144 = sphi 0, %s128
    $region4: #{tpu_custom_call.1} parent=1 // loop_header_branch
      %23 = sbr.rel (%p21) target = $region8
    $region5: #{tpu_custom_call.1} parent=1 // loop_body
      %s25 = ssub.s32 %s20, 1
      %s26 = ssub.s32 %s20, 2
      %s27 = sadd.s32 %s20, 1
      %s28 = ssub.s32 %s20, %s27
      %p29 = scmp.eq.s32.totalorder %s28, 0
      %s31 = sadd.s32 %s30, 1
      %s32 = scalar_select %p29, %s30, %s31
      %p35 = pneg %p29
      %p36 = scmp.eq.s32.totalorder %s20, 1
      %p37 = por %p35, %p36
      %p38 = scmp.ne.s32.totalorder %s30, %s33
      %p39 = scmp.eq.s32.totalorder %s20, 0
      %p40 = por %p38, %p39
      %p41 = scmp.ne.s32.totalorder %s30, %s33
      %p42 = scmp.eq.s32.totalorder %s25, 1
      %p43 = por %p41, %p42
      %p44 = scmp.ne.s32.totalorder %s33, %s34
      %p45 = scmp.eq.s32.totalorder %s25, 0
      %p46 = por %p44, %p45
      %p47 = scmp.ne.s32.totalorder %s33, %s34
      %p48 = scmp.eq.s32.totalorder %s26, 1
      %p49 = por %p47, %p48
      %p51 = scmp.ne.s32.totalorder %s34, %s50
      %p52 = scmp.eq.s32.totalorder %s26, 0
      %p53 = por %p51, %p52
      %s54 = ssub.s32 %s20, %s27
      %p55 = scmp.eq.s32.totalorder %s54, 0
      %s57 = sadd.s32 %s56, 1
      %s58 = scalar_select %p55, %s56, %s57
      %p61 = pneg %p55
      %p62 = scmp.eq.s32.totalorder %s20, 1
      %p63 = por %p61, %p62
      %p64 = scmp.ne.s32.totalorder %s56, %s59
      %p65 = scmp.eq.s32.totalorder %s20, 0
      %p66 = por %p64, %p65
      %p67 = scmp.ne.s32.totalorder %s56, %s59
      %p68 = scmp.eq.s32.totalorder %s25, 1
      %p69 = por %p67, %p68
      %p70 = scmp.ne.s32.totalorder %s59, %s60
      %p71 = scmp.eq.s32.totalorder %s25, 0
      %p72 = por %p70, %p71
      %p73 = scmp.ne.s32.totalorder %s59, %s60
      %p74 = scmp.eq.s32.totalorder %s26, 1
      %p75 = por %p73, %p74
      %p77 = scmp.ne.s32.totalorder %s60, %s76
      %p78 = scmp.eq.s32.totalorder %s26, 0
      %p79 = por %p77, %p78
      %s81 = sadd.s32 %s80, 1
      %p84 = scmp.eq.s32.totalorder %s20, 1
      %p85 = scmp.ne.s32.totalorder %s80, %s82
      %p86 = scmp.eq.s32.totalorder %s20, 0
      %p87 = por %p85, %p86
      %p88 = scmp.ne.s32.totalorder %s80, %s82
      %p89 = scmp.eq.s32.totalorder %s25, 1
      %p90 = por %p88, %p89
      %p91 = scmp.ne.s32.totalorder %s82, %s83
      %p92 = scmp.eq.s32.totalorder %s25, 0
      %p93 = por %p91, %p92
      %p94 = scmp.ne.s32.totalorder %s82, %s83
      %p95 = scmp.eq.s32.totalorder %s26, 1
      %p96 = por %p94, %p95
      %p98 = scmp.ne.s32.totalorder %s83, %s97
      %p99 = scmp.eq.s32.totalorder %s26, 0
      %p100 = por %p98, %p99
      %s102 = sadd.s32 %s101, 1
      %p105 = scmp.eq.s32.totalorder %s20, 1
      %p106 = scmp.ne.s32.totalorder %s101, %s103
      %p107 = scmp.eq.s32.totalorder %s20, 0
      %p108 = por %p106, %p107
      %p109 = scmp.ne.s32.totalorder %s101, %s103
      %p110 = scmp.eq.s32.totalorder %s25, 1
      %p111 = por %p109, %p110
      %p112 = scmp.ne.s32.totalorder %s103, %s104
      %p113 = scmp.eq.s32.totalorder %s25, 0
      %p114 = por %p112, %p113
      %p115 = scmp.ne.s32.totalorder %s103, %s104
      %p116 = scmp.eq.s32.totalorder %s26, 1
      %p117 = por %p115, %p116
      %p119 = scmp.ne.s32.totalorder %s104, %s118
      %p120 = scmp.eq.s32.totalorder %s26, 0
      %p121 = por %p119, %p120
      %s122 = ssub.s32 %s20, %s27
      %p123 = scmp.eq.s32.totalorder %s122, 0
      %s125 = sadd.s32 %s124, 1
      %s126 = scalar_select %p123, %s124, %s125
      %p129 = pneg %p123
      %p130 = scmp.eq.s32.totalorder %s20, 1
      %p131 = por %p129, %p130
      %p132 = scmp.ne.s32.totalorder %s124, %s127
      %p133 = scmp.eq.s32.totalorder %s20, 0
      %p134 = por %p132, %p133
      %p135 = scmp.ne.s32.totalorder %s124, %s127
      %p136 = scmp.eq.s32.totalorder %s25, 1
      %p137 = por %p135, %p136
      %p138 = scmp.ne.s32.totalorder %s127, %s128
      %p139 = scmp.eq.s32.totalorder %s25, 0
      %p140 = por %p138, %p139
      %p141 = scmp.ne.s32.totalorder %s127, %s128
      %p142 = scmp.eq.s32.totalorder %s26, 1
      %p143 = por %p141, %p142
      %p145 = scmp.ne.s32.totalorder %s128, %s144
      %p146 = scmp.eq.s32.totalorder %s26, 0
      %p147 = por %p145, %p146
      %p148 = scmp.le.s32.totalorder 1, %s20
      %p149 = scmp.lt.s32.totalorder %s20, 3
      %p150 = pnand %p148, %p149
      %p151 = pneg %p150
      // Predicated region
      $region9: #{tpu_custom_call.1} parent=5 // pred_check
        _
      $region10: #{tpu_custom_call.1} parent=5 // pred_check_branch
        %153 = sbr.rel (%p150) target = $region12
      $region11: #{tpu_custom_call.1} parent=5 // pred_region
        %s154 = ssub.s32 %s20, 1
        // Predicated region
        $region13: #{tpu_custom_call.1} parent=11 // pred_check
          %p155 = pneg %p93
        $region14: #{tpu_custom_call.1} parent=11 // pred_check_branch
          %157 = sbr.rel (%p155) target = $region16
        $region15: #{tpu_custom_call.1} parent=11 // pred_region
          %s159 = ssub.s32 512, 512
          %160 = vsyncadd [#allocation6], %s159
          %s161 = sshll.u32 [#allocation7], 4
          %s162 = int_to_ptr.vmem [resolvable:$true] %s161
          %167 = dma.hbm_to_vmem [thread:$0]  %s2, 512, %s162, [#allocation6], 128, 128, 8
        $region16: #{tpu_custom_call.1} parent=11 // pred_fallthru
          _
        // Predicated region
        $region17: #{tpu_custom_call.1} parent=11 // pred_check
          %p168 = pneg %p114
        $region18: #{tpu_custom_call.1} parent=11 // pred_check_branch
          %170 = sbr.rel (%p168) target = $region20
        $region19: #{tpu_custom_call.1} parent=11 // pred_region
          %s172 = ssub.s32 512, 512
          %173 = vsyncadd [#allocation9], %s172
          %s174 = sshll.u32 [#allocation8], 4
          %s175 = int_to_ptr.vmem [resolvable:$true] %s174
          %180 = dma.hbm_to_vmem [thread:$0]  %s3, 512, %s175, [#allocation9], 128, 128, 8
        $region20: #{tpu_custom_call.1} parent=11 // pred_fallthru
          _
      $region12: #{tpu_custom_call.1} parent=5 // pred_fallthru
        _
      %p181 = scmp.lt.s32.totalorder %s20, 2
      // Predicated region
      $region21: #{tpu_custom_call.1} parent=5 // pred_check
        %p182 = pneg %p181
      $region22: #{tpu_custom_call.1} parent=5 // pred_check_branch
        %184 = sbr.rel (%p182) target = $region24
      $region23: #{tpu_custom_call.1} parent=5 // pred_region
        // Predicated region
        $region25: #{tpu_custom_call.1} parent=23 // pred_check
          %p185 = pneg %p40
        $region26: #{tpu_custom_call.1} parent=23 // pred_check_branch
          %187 = sbr.rel (%p185) target = $region28
        $region27: #{tpu_custom_call.1} parent=23 // pred_region
          %s188 = sand.u32 %s30, 1
          %s189 = scalar_lea.sflag [#allocation3], %s188
          %s190 = sand.u32 %s30, 1
          %s191 = smul.addr %s190, 8
          %s192 = scalar_lea.vmem [#allocation2], %s191
          %s194 = ssub.s32 128, 128
          %195 = vsyncadd %s189, %s194
          %s196 = smul.addr %s20, 128
          %s197 = scalar_lea.hbm %s0, %s196
          %s199 = sshll.u32 %s192, 4
          %s200 = int_to_ptr.vmem [resolvable:$true] %s199
          %202 = dma.hbm_to_vmem [thread:$0]  %s197, 128, %s200, %s189
        $region28: #{tpu_custom_call.1} parent=23 // pred_fallthru
          _
        // Predicated region
        $region29: #{tpu_custom_call.1} parent=23 // pred_check
          %p203 = pneg %p66
        $region30: #{tpu_custom_call.1} parent=23 // pred_check_branch
          %205 = sbr.rel (%p203) target = $region32
        $region31: #{tpu_custom_call.1} parent=23 // pred_region
          %s206 = sand.u32 %s20, 1
          %s207 = scalar_lea.sflag [#allocation6], %s206
          %s208 = sand.u32 %s56, 1
          %s209 = smul.addr %s208, 8
          %s210 = scalar_lea.vmem [#allocation5], %s209
          %s212 = ssub.s32 128, 128
          %213 = vsyncadd %s207, %s212
          %s214 = smul.addr %s20, 128
          %s215 = scalar_lea.hbm %s1, %s214
          %s217 = sshll.u32 %s210, 4
          %s218 = int_to_ptr.vmem [resolvable:$true] %s217
          %220 = dma.hbm_to_vmem [thread:$0]  %s215, 128, %s218, %s207
        $region32: #{tpu_custom_call.1} parent=23 // pred_fallthru
          _
      $region24: #{tpu_custom_call.1} parent=5 // pred_fallthru
        _
      %p221 = scmp.le.s32.totalorder 1, %s20
      %p222 = scmp.lt.s32.totalorder %s20, 3
      %p223 = pnand %p221, %p222
      %p224 = pneg %p223
      // Predicated region
      $region33: #{tpu_custom_call.1} parent=5 // pred_check
        _
      $region34: #{tpu_custom_call.1} parent=5 // pred_check_branch
        %226 = sbr.rel (%p223) target = $region36
      $region35: #{tpu_custom_call.1} parent=5 // pred_region
        %s227 = ssub.s32 %s20, 1
        %s228 = sand.u32 %s33, 1
        %s229 = scalar_lea.sflag [#allocation3], %s228
        %s230 = sand.u32 %s33, 1
        %s231 = smul.addr %s230, 8
        %s232 = scalar_lea.vmem [#allocation2], %s231
        // Predicated region
        $region37: #{tpu_custom_call.1} parent=35 // pred_check
          %p233 = pneg %p46
        $region38: #{tpu_custom_call.1} parent=35 // pred_check_branch
          %235 = sbr.rel (%p233) target = $region40
        $region39: #{tpu_custom_call.1} parent=35 // pred_region
          %236 = dma.done %s229, 128
        $region40: #{tpu_custom_call.1} parent=35 // pred_fallthru
          _
        %s237 = sand.u32 %s25, 1
        %s238 = scalar_lea.sflag [#allocation6], %s237
        %s239 = sand.u32 %s59, 1
        %s240 = smul.addr %s239, 8
        %s241 = scalar_lea.vmem [#allocation5], %s240
        // Predicated region
        $region41: #{tpu_custom_call.1} parent=35 // pred_check
          %p242 = pneg %p72
        $region42: #{tpu_custom_call.1} parent=35 // pred_check_branch
          %244 = sbr.rel (%p242) target = $region44
        $region43: #{tpu_custom_call.1} parent=35 // pred_region
          %245 = dma.done %s238, 128
        $region44: #{tpu_custom_call.1} parent=35 // pred_fallthru
          _
        // Predicated region
        $region45: #{tpu_custom_call.1} parent=35 // pred_check
          %p246 = pneg %p93
        $region46: #{tpu_custom_call.1} parent=35 // pred_check_branch
          %248 = sbr.rel (%p246) target = $region48
        $region47: #{tpu_custom_call.1} parent=35 // pred_region
          %249 = dma.done [#allocation6], 512
        $region48: #{tpu_custom_call.1} parent=35 // pred_fallthru
          _
        // Predicated region
        $region49: #{tpu_custom_call.1} parent=35 // pred_check
          %p250 = pneg %p114
        $region50: #{tpu_custom_call.1} parent=35 // pred_check_branch
          %252 = sbr.rel (%p250) target = $region52
        $region51: #{tpu_custom_call.1} parent=35 // pred_region
          %253 = dma.done [#allocation9], 512
        $region52: #{tpu_custom_call.1} parent=35 // pred_fallthru
          _
        %s254 = sand.u32 %s33, 1
        %s255 = scalar_lea.sflag [#allocation3], %s254
        %s256 = sand.u32 %s33, 1
        %s257 = smul.addr %s256, 8
        %s258 = scalar_lea.vmem [#allocation2], %s257
        %p259 = pneg %p46
        %p260 = pneg %p43
        %s261 = sand.u32 %s25, 1
        %s262 = scalar_lea.sflag [#allocation6], %s261
        %s263 = sand.u32 %s59, 1
        %s264 = smul.addr %s263, 8
        %s265 = scalar_lea.vmem [#allocation5], %s264
        %p266 = pneg %p72
        %p267 = pneg %p69
        %p268 = pneg %p93
        %p269 = pneg %p90
        %p270 = pneg %p114
        %p271 = pneg %p111
        %p272 = pneg %p140
        %p273 = pneg %p137
        %s274 = sand.u32 %s127, 1
        %s275 = scalar_lea.sflag [#allocation4], %s274
        %s276 = sand.u32 %s127, 1
        %s277 = smul.addr %s276, 8
        %s278 = scalar_lea.vmem [#allocation10], %s277
        %v279 = vld [vmem:[%s232] sm:$0xff]
        %v280 = vld [vmem:[%s241] sm:$0xff]
        %v281 = vld [vmem:[#allocation7] sm:$0xff]
        %v282 = vld [vmem:[#allocation7 + $0x8] sm:$0xff]
        %v283 = vld [vmem:[#allocation7 + $0x10] sm:$0xff]
        %v284 = vld [vmem:[#allocation7 + $0x18] sm:$0xff]
        %vm285 = vcmask 261120
        %v287 = vsel %vm285, %v279, 0
        %289 = vmatprep.subr.mxu0 0.0
        %290 = vmatpush1.msra.mxu0 0.0
        %291 = vmatprep.subr.mxu0 0.0
        %292 = vmatpush1.msra.mxu0 0.0
        %293 = vmatprep.subr.mxu0 0.0
        %294 = vmatpush1.msra.mxu0 0.0
        %295 = vmatprep.subr.mxu0 0.0
        %296 = vmatpush1.msra.mxu0 0.0
        %297 = vmatprep.subr.mxu0 0.0
        %298 = vmatpush1.msra.mxu0 0.0
        %299 = vmatprep.subr.mxu0 0.0
        %300 = vmatpush1.msra.mxu0 0.0
        %301 = vmatprep.subr.mxu0 0.0
        %302 = vmatpush1.msra.mxu0 0.0
        %303 = vmatprep.subr.mxu0 0.0
        %304 = vmatpush1.msra.mxu0 0.0
        %305 = vmatprep.subr.mxu0 0.0
        %306 = vmatpush1.msra.mxu0 0.0
        %307 = vmatprep.subr.mxu0 0.0
        %308 = vmatpush1.msra.mxu0 0.0
        %309 = vmatprep.subr.mxu0 0.0
        %310 = vmatpush1.msra.mxu0 0.0
        %311 = vmatprep.subr.mxu0 0.0
        %312 = vmatpush1.msra.mxu0 0.0
        %313 = vmatprep.subr.mxu0 0.0
        %314 = vmatpush1.msra.mxu0 %v284
        %315 = vmatprep.subr.mxu0 0.0
        %316 = vmatpush1.msra.mxu0 %v283
        %317 = vmatprep.subr.mxu0 0.0
        %318 = vmatpush1.msra.mxu0 %v282
        %319 = vmatprep.subr.mxu0 0.0
        %320 = vmatpush1.msra.mxu0 %v281
        %321 = vmatprep.subr.mxu0 0.0
        %322 = vmatpush2.msra.mxu0 0.0
        %323 = vmatprep.subr.mxu0 0.0
        %324 = vmatpush2.msra.mxu0 0.0
        %325 = vmatprep.subr.mxu0 0.0
        %326 = vmatpush2.msra.mxu0 0.0
        %327 = vmatprep.subr.mxu0 0.0
        %328 = vmatpush2.msra.mxu0 0.0
        %329 = vmatprep.subr.mxu0 0.0
        %330 = vmatpush2.msra.mxu0 0.0
        %331 = vmatprep.subr.mxu0 0.0
        %332 = vmatpush2.msra.mxu0 0.0
        %333 = vmatprep.subr.mxu0 0.0
        %334 = vmatpush2.msra.mxu0 0.0
        %335 = vmatprep.subr.mxu0 0.0
        %336 = vmatpush2.msra.mxu0 0.0
        %337 = vmatprep.subr.mxu0 0.0
        %338 = vmatpush2.msra.mxu0 0.0
        %339 = vmatprep.subr.mxu0 0.0
        %340 = vmatpush2.msra.mxu0 0.0
        %341 = vmatprep.subr.mxu0 0.0
        %342 = vmatpush2.msra.mxu0 0.0
        %343 = vmatprep.subr.mxu0 0.0
        %344 = vmatpush2.msra.mxu0 0.0
        %345 = vmatprep.subr.mxu0 0.0
        %346 = vmatpush2.msra.mxu0 0.0
        %347 = vmatprep.subr.mxu0 0.0
        %348 = vmatpush2.msra.mxu0 0.0
        %349 = vmatprep.subr.mxu0 0.0
        %350 = vmatpush2.msra.mxu0 0.0
        %351 = vmatprep.subr.mxu0 0.0
        %352 = vmatpush2.msra.mxu0 0.0
        %353 = vmatprep.mubr.f32.mxu0 0.0
        %354 = vmatmul.mubr.f32.gmra.mxu0 %v287
        %v355 = vpop.f32.mrf.mxu0
        %v356 = vadd.f32 0.0, %v355
        %v357 = vpop.f32.mrf.mxu0
        %358 = vdwg.mxu0
        %v359 = vld [vmem:[#allocation8] sm:$0xff]
        %v360 = vld [vmem:[#allocation8 + $0x8] sm:$0xff]
        %v361 = vld [vmem:[#allocation8 + $0x10] sm:$0xff]
        %v362 = vld [vmem:[#allocation8 + $0x18] sm:$0xff]
        %v364 = vsel %vm285, %v280, 0
        %366 = vmatprep.subr.mxu0 0.0
        %367 = vmatpush1.msra.mxu0 0.0
        %368 = vmatprep.subr.mxu0 0.0
        %369 = vmatpush1.msra.mxu0 0.0
        %370 = vmatprep.subr.mxu0 0.0
        %371 = vmatpush1.msra.mxu0 0.0
        %372 = vmatprep.subr.mxu0 0.0
        %373 = vmatpush1.msra.mxu0 0.0
        %374 = vmatprep.subr.mxu0 0.0
        %375 = vmatpush1.msra.mxu0 0.0
        %376 = vmatprep.subr.mxu0 0.0
        %377 = vmatpush1.msra.mxu0 0.0
        %378 = vmatprep.subr.mxu0 0.0
        %379 = vmatpush1.msra.mxu0 0.0
        %380 = vmatprep.subr.mxu0 0.0
        %381 = vmatpush1.msra.mxu0 0.0
        %382 = vmatprep.subr.mxu0 0.0
        %383 = vmatpush1.msra.mxu0 0.0
        %384 = vmatprep.subr.mxu0 0.0
        %385 = vmatpush1.msra.mxu0 0.0
        %386 = vmatprep.subr.mxu0 0.0
        %387 = vmatpush1.msra.mxu0 0.0
        %388 = vmatprep.subr.mxu0 0.0
        %389 = vmatpush1.msra.mxu0 0.0
        %390 = vmatprep.subr.mxu0 0.0
        %391 = vmatpush1.msra.mxu0 %v362
        %392 = vmatprep.subr.mxu0 0.0
        %393 = vmatpush1.msra.mxu0 %v361
        %394 = vmatprep.subr.mxu0 0.0
        %395 = vmatpush1.msra.mxu0 %v360
        %396 = vmatprep.subr.mxu0 0.0
        %397 = vmatpush1.msra.mxu0 %v359
        %398 = vmatprep.subr.mxu0 0.0
        %399 = vmatpush2.msra.mxu0 0.0
        %400 = vmatprep.subr.mxu0 0.0
        %401 = vmatpush2.msra.mxu0 0.0
        %402 = vmatprep.subr.mxu0 0.0
        %403 = vmatpush2.msra.mxu0 0.0
        %404 = vmatprep.subr.mxu0 0.0
        %405 = vmatpush2.msra.mxu0 0.0
        %406 = vmatprep.subr.mxu0 0.0
        %407 = vmatpush2.msra.mxu0 0.0
        %408 = vmatprep.subr.mxu0 0.0
        %409 = vmatpush2.msra.mxu0 0.0
        %410 = vmatprep.subr.mxu0 0.0
        %411 = vmatpush2.msra.mxu0 0.0
        %412 = vmatprep.subr.mxu0 0.0
        %413 = vmatpush2.msra.mxu0 0.0
        %414 = vmatprep.subr.mxu0 0.0
        %415 = vmatpush2.msra.mxu0 0.0
        %416 = vmatprep.subr.mxu0 0.0
        %417 = vmatpush2.msra.mxu0 0.0
        %418 = vmatprep.subr.mxu0 0.0
        %419 = vmatpush2.msra.mxu0 0.0
        %420 = vmatprep.subr.mxu0 0.0
        %421 = vmatpush2.msra.mxu0 0.0
        %422 = vmatprep.subr.mxu0 0.0
        %423 = vmatpush2.msra.mxu0 0.0
        %424 = vmatprep.subr.mxu0 0.0
        %425 = vmatpush2.msra.mxu0 0.0
        %426 = vmatprep.subr.mxu0 0.0
        %427 = vmatpush2.msra.mxu0 0.0
        %428 = vmatprep.subr.mxu0 0.0
        %429 = vmatpush2.msra.mxu0 0.0
        %430 = vmatprep.mubr.f32.mxu0 0.0
        %431 = vmatmul.mubr.f32.gmra.mxu0 %v364
        %v432 = vpop.f32.mrf.mxu0
        %v433 = vadd.f32 0.0, %v432
        %v434 = vpop.f32.mrf.mxu0
        %435 = vdwg.mxu0
        %v437 = vsel %vm285, %v356, 0
        %v440 = vsel %vm285, %v433, 0
        %442 = vmatprep.subr.mxu0 0.0
        %443 = vmatpush1.xpose.msra.mxu0 0.0
        %444 = vmatprep.subr.mxu0 0.0
        %445 = vmatpush1.xpose.msra.mxu0 0.0
        %446 = vmatprep.subr.mxu0 0.0
        %447 = vmatpush1.xpose.msra.mxu0 0.0
        %448 = vmatprep.subr.mxu0 0.0
        %449 = vmatpush1.xpose.msra.mxu0 0.0
        %450 = vmatprep.subr.mxu0 0.0
        %451 = vmatpush1.xpose.msra.mxu0 0.0
        %452 = vmatprep.subr.mxu0 0.0
        %453 = vmatpush1.xpose.msra.mxu0 0.0
        %454 = vmatprep.subr.mxu0 0.0
        %455 = vmatpush1.xpose.msra.mxu0 0.0
        %456 = vmatprep.subr.mxu0 0.0
        %457 = vmatpush1.xpose.msra.mxu0 0.0
        %458 = vmatprep.subr.mxu0 0.0
        %459 = vmatpush1.xpose.msra.mxu0 0.0
        %460 = vmatprep.subr.mxu0 0.0
        %461 = vmatpush1.xpose.msra.mxu0 0.0
        %462 = vmatprep.subr.mxu0 0.0
        %463 = vmatpush1.xpose.msra.mxu0 0.0
        %464 = vmatprep.subr.mxu0 0.0
        %465 = vmatpush1.xpose.msra.mxu0 0.0
        %466 = vmatprep.subr.mxu0 0.0
        %467 = vmatpush1.xpose.msra.mxu0 0.0
        %468 = vmatprep.subr.mxu0 0.0
        %469 = vmatpush1.xpose.msra.mxu0 0.0
        %470 = vmatprep.subr.mxu0 0.0
        %471 = vmatpush1.xpose.msra.mxu0 0.0
        %472 = vmatprep.subr.mxu0 0.0
        %473 = vmatpush1.xpose.msra.mxu0 %v440
        %474 = vmatprep.subr.mxu0 0.0
        %475 = vmatpush2.xpose.msra.mxu0 0.0
        %476 = vmatprep.subr.mxu0 0.0
        %477 = vmatpush2.xpose.msra.mxu0 0.0
        %478 = vmatprep.subr.mxu0 0.0
        %479 = vmatpush2.xpose.msra.mxu0 0.0
        %480 = vmatprep.subr.mxu0 0.0
        %481 = vmatpush2.xpose.msra.mxu0 0.0
        %482 = vmatprep.subr.mxu0 0.0
        %483 = vmatpush2.xpose.msra.mxu0 0.0
        %484 = vmatprep.subr.mxu0 0.0
        %485 = vmatpush2.xpose.msra.mxu0 0.0
        %486 = vmatprep.subr.mxu0 0.0
        %487 = vmatpush2.xpose.msra.mxu0 0.0
        %488 = vmatprep.subr.mxu0 0.0
        %489 = vmatpush2.xpose.msra.mxu0 0.0
        %490 = vmatprep.subr.mxu0 0.0
        %491 = vmatpush2.xpose.msra.mxu0 0.0
        %492 = vmatprep.subr.mxu0 0.0
        %493 = vmatpush2.xpose.msra.mxu0 0.0
        %494 = vmatprep.subr.mxu0 0.0
        %495 = vmatpush2.xpose.msra.mxu0 0.0
        %496 = vmatprep.subr.mxu0 0.0
        %497 = vmatpush2.xpose.msra.mxu0 0.0
        %498 = vmatprep.subr.mxu0 0.0
        %499 = vmatpush2.xpose.msra.mxu0 0.0
        %500 = vmatprep.subr.mxu0 0.0
        %501 = vmatpush2.xpose.msra.mxu0 0.0
        %502 = vmatprep.subr.mxu0 0.0
        %503 = vmatpush2.xpose.msra.mxu0 0.0
        %504 = vmatprep.subr.mxu0 0.0
        %505 = vmatpush2.xpose.msra.mxu0 0.0
        %506 = vmatprep.mubr.f32.mxu0 0.0
        %507 = vmatmul.mubr.f32.gmra.mxu0 %v437
        %v508 = vpop.f32.mrf.mxu0
        %v509 = vadd.f32 0.0, %v508
        %v510 = vpop.f32.mrf.mxu0
        %511 = vdwg.mxu0
        %vm512 = vcmask 64512
        %v513 = vsel %vm512, %v509, -inf
        %514 = vmax.xlane.f32.xlu0 %v513
        %v515 = vpop.xlane.xlu0 %514
        %v516 = vsub.f32 %v509, %v515
        %v517 = vmul.f32 %v516, 1.442695
        %v518 = vpow.pop %v517
        %v519 = vsel %vm512, %v518, 0.0
        %520 = vadd.xlane.f32.xlu0 %v519
        %v521 = vpop.xlane.xlu0 %520
        %v522 = vrcp.pop %v521
        %v523 = vmul.f32 %v518, %v522
        %524 = vrot.lane.b32.xlu0 %v433, 96
        %v525 = vpop.permute.xlu0 %524
        %v528 = vsel %vm512, %v523, 0
        %530 = vmatprep.subr.mxu0 0.0
        %531 = vmatpush1.msra.mxu0 0.0
        %532 = vmatprep.subr.mxu0 0.0
        %533 = vmatpush1.msra.mxu0 0.0
        %534 = vmatprep.subr.mxu0 0.0
        %535 = vmatpush1.msra.mxu0 0.0
        %536 = vmatprep.subr.mxu0 0.0
        %537 = vmatpush1.msra.mxu0 0.0
        %538 = vmatprep.subr.mxu0 0.0
        %539 = vmatpush1.msra.mxu0 0.0
        %540 = vmatprep.subr.mxu0 0.0
        %541 = vmatpush1.msra.mxu0 0.0
        %542 = vmatprep.subr.mxu0 0.0
        %543 = vmatpush1.msra.mxu0 0.0
        %544 = vmatprep.subr.mxu0 0.0
        %545 = vmatpush1.msra.mxu0 0.0
        %546 = vmatprep.subr.mxu0 0.0
        %547 = vmatpush1.msra.mxu0 0.0
        %548 = vmatprep.subr.mxu0 0.0
        %549 = vmatpush1.msra.mxu0 0.0
        %550 = vmatprep.subr.mxu0 0.0
        %551 = vmatpush1.msra.mxu0 0.0
        %552 = vmatprep.subr.mxu0 0.0
        %553 = vmatpush1.msra.mxu0 0.0
        %554 = vmatprep.subr.mxu0 0.0
        %555 = vmatpush1.msra.mxu0 0.0
        %556 = vmatprep.subr.mxu0 0.0
        %557 = vmatpush1.msra.mxu0 0.0
        %558 = vmatprep.subr.mxu0 0.0
        %559 = vmatpush1.msra.mxu0 0.0
        %560 = vmatprep.subr.mxu0 0.0
        %561 = vmatpush1.msra.mxu0 %v525
        %562 = vmatprep.subr.mxu0 0.0
        %563 = vmatpush2.msra.mxu0 0.0
        %564 = vmatprep.subr.mxu0 0.0
        %565 = vmatpush2.msra.mxu0 0.0
        %566 = vmatprep.subr.mxu0 0.0
        %567 = vmatpush2.msra.mxu0 0.0
        %568 = vmatprep.subr.mxu0 0.0
        %569 = vmatpush2.msra.mxu0 0.0
        %570 = vmatprep.subr.mxu0 0.0
        %571 = vmatpush2.msra.mxu0 0.0
        %572 = vmatprep.subr.mxu0 0.0
        %573 = vmatpush2.msra.mxu0 0.0
        %574 = vmatprep.subr.mxu0 0.0
        %575 = vmatpush2.msra.mxu0 0.0
        %576 = vmatprep.subr.mxu0 0.0
        %577 = vmatpush2.msra.mxu0 0.0
        %578 = vmatprep.subr.mxu0 0.0
        %579 = vmatpush2.msra.mxu0 0.0
        %580 = vmatprep.subr.mxu0 0.0
        %581 = vmatpush2.msra.mxu0 0.0
        %582 = vmatprep.subr.mxu0 0.0
        %583 = vmatpush2.msra.mxu0 0.0
        %584 = vmatprep.subr.mxu0 0.0
        %585 = vmatpush2.msra.mxu0 0.0
        %586 = vmatprep.subr.mxu0 0.0
        %587 = vmatpush2.msra.mxu0 0.0
        %588 = vmatprep.subr.mxu0 0.0
        %589 = vmatpush2.msra.mxu0 0.0
        %590 = vmatprep.subr.mxu0 0.0
        %591 = vmatpush2.msra.mxu0 0.0
        %592 = vmatprep.subr.mxu0 0.0
        %593 = vmatpush2.msra.mxu0 0.0
        %594 = vmatprep.mubr.f32.mxu0 0.0
        %595 = vmatmul.mubr.f32.gmra.mxu0 %v528
        %v596 = vpop.f32.mrf.mxu0
        %v597 = vadd.f32 0.0, %v596
        %v598 = vpop.f32.mrf.mxu0
        %599 = vdwg.mxu0
        %600 = vst.msk [vmem:[%s278] sm:$0xff] %vm285, %v597
        %s601 = sand.u32 %s127, 1
        %s602 = scalar_lea.sflag [#allocation4], %s601
        %s603 = sand.u32 %s127, 1
        %s604 = smul.addr %s603, 8
        %s605 = scalar_lea.vmem [#allocation10], %s604
        // Predicated region
        $region53: #{tpu_custom_call.1} parent=35 // pred_check
          %p606 = pneg %p137
        $region54: #{tpu_custom_call.1} parent=35 // pred_check_branch
          %608 = sbr.rel (%p606) target = $region56
        $region55: #{tpu_custom_call.1} parent=35 // pred_region
          %s610 = ssub.s32 128, 128
          %611 = vsyncadd %s602, %s610
          %s612 = smul.addr %s25, 128
          %s613 = scalar_lea.hbm %s4, %s612
          %s615 = sshll.u32 %s605, 4
          %s616 = int_to_ptr.vmem [resolvable:$true] %s615
          %618 = dma.vmem_to_hbm [thread:$0]  %s616, 128, %s613, %s602
        $region56: #{tpu_custom_call.1} parent=35 // pred_fallthru
          _
      $region36: #{tpu_custom_call.1} parent=5 // pred_fallthru
        _
      %p619 = scmp.le.s32.totalorder 2, %s20
      // Predicated region
      $region57: #{tpu_custom_call.1} parent=5 // pred_check
        %p620 = pneg %p619
      $region58: #{tpu_custom_call.1} parent=5 // pred_check_branch
        %622 = sbr.rel (%p620) target = $region60
      $region59: #{tpu_custom_call.1} parent=5 // pred_region
        %s623 = ssub.s32 %s20, 2
        // Predicated region
        $region61: #{tpu_custom_call.1} parent=59 // pred_check
          %p624 = pneg %p143
        $region62: #{tpu_custom_call.1} parent=59 // pred_check_branch
          %626 = sbr.rel (%p624) target = $region64
        $region63: #{tpu_custom_call.1} parent=59 // pred_region
          %s627 = sand.u32 %s128, 1
          %s628 = scalar_lea.sflag [#allocation4], %s627
          %s629 = sand.u32 %s128, 1
          %s630 = smul.addr %s629, 8
          %s631 = scalar_lea.vmem [#allocation10], %s630
          %632 = dma.done %s628, 128
        $region64: #{tpu_custom_call.1} parent=59 // pred_fallthru
          _
      $region60: #{tpu_custom_call.1} parent=5 // pred_fallthru
        _
    $region6: #{tpu_custom_call.1} parent=1 // loop_footer
      %s24 = sadd.s32 1, %s20
    $region7: #{tpu_custom_call.1} parent=1 // loop_footer_branch
      %19 = sbr.rel target = $region3
    $region8: #{tpu_custom_call.1} parent=1 // loop_exit
      _
    %633 = vsyncpa [#allocation3], 1
    %s634 = scalar_lea.sflag [#allocation3], 1
    %635 = vsyncpa %s634, 1
    %636 = vsyncpa [#allocation6], 1
    %s637 = scalar_lea.sflag [#allocation6], 1
    %638 = vsyncpa %s637, 1
    %639 = vsyncpa [#allocation9], 1
    %640 = vsyncpa [#allocation4], 1
    %s641 = scalar_lea.sflag [#allocation4], 1
    %642 = vsyncpa %s641, 1

</llo_original>
